<compile_context>
chip_gen: v7x
topology: tpu7x:2x2x1
jax: 0.10.0
libtpu: 0.0.40
codegen_flags: <defaults>
</compile_context>

<pallas_src>
import functools

import jax
import jax.numpy as jnp
from jax import lax
from jax.experimental import pallas as pl
from jax.experimental.pallas import tpu as pltpu


def _round_up(x: int, m: int) -> int:
    return ((x + m - 1) // m) * m


def _vmem_limit_bytes() -> int:
    """Generation-gated scoped-VMEM limit (v7x: 64 MiB physical, v5e/v6e: 128 MiB)."""
    cap = None
    try:
        info = pltpu.get_tpu_info()
        cap = getattr(info, "vmem_capacity_bytes", None)
    except Exception:
        cap = None
    if cap:
        # 3/4 of physical, capped at 100 MiB: -> ~48 MiB on v7x, ~96 MiB on v5e/v6e.
        return int(min(cap * 3 // 4, 100 * 1024 * 1024))
    return 48 * 1024 * 1024  # conservative fallback, safe on v7x


def _sublane_multiple(itemsize: int) -> int:
    # f32 -> 8, bf16 -> 16, int8/fp8 -> 32 (packed sublane tiles).
    return 8 if itemsize >= 4 else max(8, 32 // itemsize)


def _pick_tile_rows(n: int, c: int, itemsize: int, vmem_limit: int) -> int:
    """Rows per tile: large enough to amortize the ~0.35us per-grid-step
    overhead, small enough that double-buffered inputs + f32 temporaries fit
    comfortably in scoped VMEM."""
    mult = _sublane_multiple(itemsize)
    # Bytes streamed per row per input buffer: a logits row plus the
    # lane-padded (x128) targets row.
    row_stream = c * itemsize + 128 * 4
    # Target a few MiB per input buffer; scale up when more VMEM is available
    # (v5e/v6e) so large-C inputs still get big tiles.
    target_bytes = max(4 * 1024 * 1024, vmem_limit // 12)
    target_rows = max(mult, target_bytes // row_stream)
    # Full accounting: 2x double-buffered input buffers + ~4 f32 (tn, c)
    # temporaries + lane-padded (tn, 1) accumulator / focal column.
    bytes_per_row = 2 * row_stream + 4 * c * 4 + 1536
    max_rows = max(mult, int(vmem_limit * 0.7) // bytes_per_row)
    tn = min(target_rows, max_rows, _round_up(n, mult))
    return max(mult, (tn // mult) * mult)


def _per_row_focal(logits, tgt, *, alpha: float, gamma: float):
    """Per-row focal loss for one (TN, C) tile; returns (TN, 1) f32."""
    logits = logits.astype(jnp.float32)                                # (TN, C)

    # numerically stable log-softmax / cross-entropy
    m = jnp.max(logits, axis=-1, keepdims=True)                        # (TN, 1)
    shifted = logits - m                                               # (TN, C)
    lse = jnp.log(jnp.sum(jnp.exp(shifted), axis=-1, keepdims=True))   # (TN, 1)

    # fused one-hot pick: picked = shifted[target]  (no (TN,C) f32 one-hot temp)
    class_ids = lax.broadcasted_iota(jnp.int32, logits.shape, 1)       # (TN, C)
    picked = jnp.sum(jnp.where(class_ids == tgt, shifted, 0.0),
                     axis=-1, keepdims=True)                           # (TN, 1)

    ce = lse - picked                                                  # (TN, 1)
    pt = jnp.exp(-ce)                                                  # prob of target
    one_minus_pt = jnp.maximum(1.0 - pt, 0.0)

    g = float(gamma)
    if g == 0.0:
        mod = jnp.ones_like(one_minus_pt)
    elif g.is_integer() and g > 0:
        mod = lax.integer_pow(one_minus_pt, int(g))    # avoid exp(g*log(x)) path
    else:
        mod = one_minus_pt ** g

    return alpha * mod * ce                                            # (TN, 1)


def _focal_reduce_kernel(logits_ref, targets_ref, out_ref, acc_ref, *,
                         alpha, gamma, n_rows, tile_rows, steps_per_part,
                         mean, needs_mask):
    j = pl.program_id(1)                      # inner ("arbitrary") batch-tile axis

    @pl.when(j == 0)
    def _():
        acc_ref[...] = jnp.zeros_like(acc_ref)

    focal = _per_row_focal(logits_ref[...], targets_ref[...],
                           alpha=alpha, gamma=gamma)                   # (TN, 1)

    if needs_mask:
        # zero padded rows of partial / phantom tiles before accumulating
        p = pl.program_id(0)
        start = (p * steps_per_part + j) * tile_rows
        row_ids = start + lax.broadcasted_iota(jnp.int32, focal.shape, 0)
        focal = jnp.where(row_ids < n_rows, focal, 0.0)

    # vector accumulator: no per-step cross-sublane reduce / (1,1) scalar RMW
    acc_ref[...] = acc_ref[...] + focal

    @pl.when(j == pl.num_programs(1) - 1)
    def _():
        total = jnp.sum(acc_ref[...])
        if mean:
            total = total * (1.0 / float(n_rows))
        out_ref[...] = jnp.broadcast_to(total, out_ref.shape)   # (8, 128) partial


def _focal_none_kernel(logits_ref, targets_ref, out_ref, *, alpha, gamma):
    out_ref[...] = _per_row_focal(logits_ref[...], targets_ref[...],
                                  alpha=alpha, gamma=gamma)


def focal_loss(logits: jax.Array, targets: jax.Array,
               alpha: float = 1.0, gamma: float = 2.0,
               reduction: str = "mean", block_rows: int | None = None) -> jax.Array:
    """Focal loss. logits: [N, C], targets: [N] int class indices."""
    n, c = logits.shape
    targets2d = targets.astype(jnp.int32).reshape(n, 1)
    itemsize = jnp.dtype(logits.dtype).itemsize
    mult = _sublane_multiple(itemsize)

    vmem_limit = _vmem_limit_bytes()
    if block_rows is None:
        tn = _pick_tile_rows(n, c, itemsize, vmem_limit)
    else:
        tn = max(mult, (min(int(block_rows), _round_up(n, mult)) // mult) * mult)

    cost = pl.CostEstimate(
        flops=8 * n * c,
        transcendentals=n * c + 2 * n,
        bytes_accessed=n * c * itemsize + n * 4 + n * 4,
    )

    if reduction not in ("mean", "sum"):
        # reduction='none' (and any unrecognized value, matching the torch module)
        grid = (pl.cdiv(n, tn),)
        kernel = functools.partial(_focal_none_kernel,
                                   alpha=float(alpha), gamma=float(gamma))
        out = pl.pallas_call(
            kernel,
            out_shape=jax.ShapeDtypeStruct((n, 1), jnp.float32),
            grid=grid,
            in_specs=[pl.BlockSpec((tn, c), lambda i: (i, 0)),
                      pl.BlockSpec((tn, 1), lambda i: (i, 0))],
            out_specs=pl.BlockSpec((tn, 1), lambda i: (i, 0)),
            compiler_params=pltpu.CompilerParams(
                dimension_semantics=("parallel",),   # batch axis fully independent
                vmem_limit_bytes=vmem_limit),
            cost_estimate=cost,
        )(logits, targets2d)
        # TODO(synk): a lane-dense (1, N) output (avoids lane-masked (TN,1)
        # writeback) needs an in-kernel sublane->lane transpose that is not
        # portably supported by Mosaic; keeping the proven (N, 1) layout.
        return out[:, 0]

    # -------- reduction = 'mean' | 'sum' --------
    steps_total = pl.cdiv(n, tn)
    split = 2 if steps_total >= 2 else 1          # feed both v7x TensorCores
    spp = pl.cdiv(steps_total, split)             # tiles per part
    needs_mask = (split * spp * tn != n)          # padded rows or phantom tiles

    last_block = steps_total - 1

    def row_block(p, j):
        # clamp so phantom steps (odd tile counts) re-read a valid block;
        # their rows are masked to zero inside the kernel.
        return (jnp.minimum(p * spp + j, last_block), 0)

    kernel = functools.partial(
        _focal_reduce_kernel, alpha=float(alpha), gamma=float(gamma),
        n_rows=n, tile_rows=tn, steps_per_part=spp,
        mean=(reduction == "mean"), needs_mask=needs_mask)

    out = pl.pallas_call(
        kernel,
        out_shape=jax.ShapeDtypeStruct((split * 8, 128), jnp.float32),
        grid=(split, spp),
        in_specs=[pl.BlockSpec((tn, c), row_block),
                  pl.BlockSpec((tn, 1), row_block)],
        out_specs=pl.BlockSpec((8, 128), lambda p, j: (p, 0)),
        scratch_shapes=[pltpu.VMEM((tn, 1), jnp.float32)],
        compiler_params=pltpu.CompilerParams(
            dimension_semantics=("parallel", "arbitrary"),
            vmem_limit_bytes=vmem_limit),
        cost_estimate=cost,
    )(logits, targets2d)

    # one partial per part (already scaled by 1/N for 'mean'); tiny final add
    partials = out.reshape(split, 8, 128)[:, 0, 0]
    return jnp.sum(partials)


def _focal_loss_ref(logits, targets, alpha=1.0, gamma=2.0, reduction="mean"):
    # pure-JAX reference (matches F.cross_entropy + focal modulation)
    logp = jax.nn.log_softmax(logits.astype(jnp.float32), axis=-1)
    ce = -jnp.take_along_axis(logp, targets[:, None].astype(jnp.int32), axis=-1)[:, 0]
    pt = jnp.exp(-ce)
    fl = alpha * (1.0 - pt) ** gamma * ce
    if reduction == "mean":
        return jnp.mean(fl)
    if reduction == "sum":
        return jnp.sum(fl)
    return fl


if __name__ == "__main__":
    key = jax.random.PRNGKey(0)
    k1, k2, k3, k4, k5, k6, k7, k8 = jax.random.split(key, 8)

    # 1) primary small case (module default reduction='mean')
    N, C = 8, 32
    logits = jax.random.normal(k1, (N, C), dtype=jnp.float32)
    targets = jax.random.randint(k2, (N,), 0, C, dtype=jnp.int32)
    loss = jax.block_until_ready(focal_loss(logits, targets, alpha=1.0, gamma=2.0))
    ref = _focal_loss_ref(logits, targets, alpha=1.0, gamma=2.0)
    assert jnp.allclose(loss, ref, atol=1e-5, rtol=1e-5), (loss, ref)

    # 2) N not a multiple of 8 (padded-row masking) + reduction='sum'
    N2, C2 = 37, 32
    logits2 = jax.random.normal(k3, (N2, C2), dtype=jnp.float32)
    targets2 = jax.random.randint(k4, (N2,), 0, C2, dtype=jnp.int32)
    loss2 = jax.block_until_ready(
        focal_loss(logits2, targets2, alpha=0.5, gamma=2.0, reduction="sum"))
    ref2 = _focal_loss_ref(logits2, targets2, alpha=0.5, gamma=2.0, reduction="sum")
    assert jnp.allclose(loss2, ref2, atol=1e-4, rtol=1e-4), (loss2, ref2)

    # 3) multi-tile + two-part (dual-TensorCore) accumulation path, forced small tiles
    N3, C3 = 1000, 32
    logits3 = jax.random.normal(k5, (N3, C3), dtype=jnp.float32)
    targets3 = jax.random.randint(k6, (N3,), 0, C3, dtype=jnp.int32)
    loss3 = jax.block_until_ready(
        focal_loss(logits3, targets3, alpha=1.0, gamma=2.0, reduction="mean",
                   block_rows=128))
    ref3 = _focal_loss_ref(logits3, targets3, alpha=1.0, gamma=2.0, reduction="mean")
    assert jnp.allclose(loss3, ref3, atol=1e-4, rtol=1e-4), (loss3, ref3)

    # 4) reduction='none' path
    loss4 = jax.block_until_ready(
        focal_loss(logits2, targets2, alpha=1.0, gamma=2.0, reduction="none"))
    ref4 = _focal_loss_ref(logits2, targets2, alpha=1.0, gamma=2.0, reduction="none")
    assert loss4.shape == (N2,)
    assert jnp.allclose(loss4, ref4, atol=1e-5, rtol=1e-5), (loss4, ref4)

    # 5) bf16 logits (in-kernel f32 compute, halved HBM traffic)
    N5, C5 = 64, 32
    logits5 = jax.random.normal(k7, (N5, C5), dtype=jnp.float32).astype(jnp.bfloat16)
    targets5 = jax.random.randint(k8, (N5,), 0, C5, dtype=jnp.int32)
    loss5 = jax.block_until_ready(focal_loss(logits5, targets5, alpha=1.0, gamma=2.0))
    ref5 = _focal_loss_ref(logits5, targets5, alpha=1.0, gamma=2.0)
    assert jnp.allclose(loss5, ref5, atol=1e-4, rtol=1e-4), (loss5, ref5)

    print("KERNEL_OK")
</pallas_src>

<mosaic_0001>
module attributes {stable_mosaic.version = 11 : i64} {
  func.func @_focal_reduce_kernel(%arg0: i32, %arg1: i32, %arg2: memref<8x32xf32, #tpu.memory_space<vmem>>, %arg3: memref<8x1xi32, #tpu.memory_space<vmem>>, %arg4: memref<8x128xf32, #tpu.memory_space<vmem>>, %arg5: memref<8x1xf32, #tpu.memory_space<vmem>>) attributes {dimension_semantics = [#tpu.dimension_semantics<parallel>, #tpu.dimension_semantics<arbitrary>], iteration_bounds = array<i64: 1, 1>, scalar_prefetch = 0 : i64, scratch_operands = 1 : i64, tpu.core_type = #tpu.core_type<tc>, window_params = [{transform_indices = @transform_0, window_bounds = array<i64: 8, 32>}, {transform_indices = @transform_1, window_bounds = array<i64: 8, 1>}, {transform_indices = @transform_2, window_bounds = array<i64: 8, 128>}]} {
    %c0_i32 = arith.constant 0 : i32
    %0 = arith.cmpi eq, %arg1, %c0_i32 : i32
    %1 = arith.extui %0 : i1 to i32
    %c0_i32_0 = arith.constant 0 : i32
    %2 = arith.cmpi ne, %1, %c0_i32_0 : i32
    scf.if %2 {
      %cst_17 = arith.constant 0.000000e+00 : f32
      %38 = vector.broadcast %cst_17 : f32 to vector<8x1xf32>
      %c0_18 = arith.constant 0 : index
      %c0_19 = arith.constant 0 : index
      %39 = vector.load %arg5[%c0_18, %c0_19] : memref<8x1xf32, #tpu.memory_space<vmem>>, vector<8x1xf32>
      tpu.vector_store %arg5[%c0_18, %c0_19], %38 {strides = array<i32>} : memref<8x1xf32, #tpu.memory_space<vmem>>, vector<8x1xf32>,
    } else {
    }
    %c0 = arith.constant 0 : index
    %c0_1 = arith.constant 0 : index
    %3 = vector.load %arg2[%c0, %c0_1] : memref<8x32xf32, #tpu.memory_space<vmem>>, vector<8x32xf32>
    %c0_2 = arith.constant 0 : index
    %c0_3 = arith.constant 0 : index
    %4 = vector.load %arg3[%c0_2, %c0_3] : memref<8x1xi32, #tpu.memory_space<vmem>>, vector<8x1xi32>
    %cst = arith.constant dense<0xFF800000> : vector<8xf32>
    %5 = vector.multi_reduction <maximumf>, %3, %cst [1] : vector<8x32xf32> to vector<8xf32>
    %6 = vector.shape_cast %5 : vector<8xf32> to vector<8x1xf32>
    %7 = vector.broadcast %6 : vector<8x1xf32> to vector<8x32xf32>
    %8 = arith.subf %3, %7 : vector<8x32xf32>
    %9 = math.exp %8 : vector<8x32xf32>
    %cst_4 = arith.constant dense<0.000000e+00> : vector<8xf32>
    %10 = vector.multi_reduction <add>, %9, %cst_4 [1] : vector<8x32xf32> to vector<8xf32>
    %11 = vector.shape_cast %10 : vector<8xf32> to vector<8x1xf32>
    %12 = math.log %11 : vector<8x1xf32>
    %13 = tpu.iota {dimensions = array<i32: 1>} : vector<8x32xi32>
    %14 = vector.broadcast %4 : vector<8x1xi32> to vector<8x32xi32>
    %15 = arith.cmpi eq, %13, %14 : vector<8x32xi32>
    %cst_5 = arith.constant 0.000000e+00 : f32
    %16 = vector.broadcast %cst_5 : f32 to vector<8x32xf32>
    %17 = arith.select %15, %8, %16 : vector<8x32xi1>, vector<8x32xf32>
    %cst_6 = arith.constant dense<0.000000e+00> : vector<8xf32>
    %18 = vector.multi_reduction <add>, %17, %cst_6 [1] : vector<8x32xf32> to vector<8xf32>
    %19 = vector.shape_cast %18 : vector<8xf32> to vector<8x1xf32>
    %20 = arith.subf %12, %19 : vector<8x1xf32>
    %cst_7 = arith.constant 0.000000e+00 : f32
    %21 = vector.broadcast %cst_7 : f32 to vector<8x1xf32>
    %22 = arith.subf %21, %20 : vector<8x1xf32>
    %23 = math.exp %22 : vector<8x1xf32>
    %cst_8 = arith.constant 1.000000e+00 : f32
    %24 = vector.broadcast %cst_8 : f32 to vector<8x1xf32>
    %25 = arith.subf %24, %23 : vector<8x1xf32>
    %cst_9 = arith.constant 0.000000e+00 : f32
    %26 = vector.broadcast %cst_9 : f32 to vector<8x1xf32>
    %27 = arith.maximumf %25, %26 : vector<8x1xf32>
    %28 = arith.mulf %27, %27 : vector<8x1xf32>
    %cst_10 = arith.constant 1.000000e+00 : f32
    %29 = vector.broadcast %cst_10 : f32 to vector<8x1xf32>
    %30 = arith.mulf %29, %28 : vector<8x1xf32>
    %31 = arith.mulf %30, %20 : vector<8x1xf32>
    %c0_11 = arith.constant 0 : index
    %c0_12 = arith.constant 0 : index
    %32 = vector.load %arg5[%c0_11, %c0_12] : memref<8x1xf32, #tpu.memory_space<vmem>>, vector<8x1xf32>
    %33 = arith.addf %32, %31 : vector<8x1xf32>
    %c0_13 = arith.constant 0 : index
    %c0_14 = arith.constant 0 : index
    %34 = vector.load %arg5[%c0_13, %c0_14] : memref<8x1xf32, #tpu.memory_space<vmem>>, vector<8x1xf32>
    tpu.vector_store %arg5[%c0_13, %c0_14], %33 {strides = array<i32>} : memref<8x1xf32, #tpu.memory_space<vmem>>, vector<8x1xf32>,
    %c0_i32_15 = arith.constant 0 : i32
    %35 = arith.cmpi eq, %arg1, %c0_i32_15 : i32
    %36 = arith.extui %35 : i1 to i32
    %c0_i32_16 = arith.constant 0 : i32
    %37 = arith.cmpi ne, %36, %c0_i32_16 : i32
    scf.if %37 {
      %c0_17 = arith.constant 0 : index
      %c0_18 = arith.constant 0 : index
      %38 = vector.load %arg5[%c0_17, %c0_18] : memref<8x1xf32, #tpu.memory_space<vmem>>, vector<8x1xf32>
      %39 = vector.shape_cast %38 : vector<8x1xf32> to vector<1x8x1xf32>
      %cst_19 = arith.constant dense<0.000000e+00> : vector<1xf32>
      %40 = vector.multi_reduction <add>, %39, %cst_19 [1, 2] : vector<1x8x1xf32> to vector<1xf32>
      %41 = vector.shape_cast %40 : vector<1xf32> to vector<1x1x1xf32>
      %42 = vector.extract %41[0, 0, 0] : f32 from vector<1x1x1xf32>
      %cst_20 = arith.constant 1.250000e-01 : f32
      %43 = arith.mulf %42, %cst_20 : f32
      %44 = vector.broadcast %43 : f32 to vector<8x128xf32>
      %c0_21 = arith.constant 0 : index
      %c0_22 = arith.constant 0 : index
      %45 = vector.load %arg4[%c0_21, %c0_22] : memref<8x128xf32, #tpu.memory_space<vmem>>, vector<8x128xf32>
      tpu.vector_store %arg4[%c0_21, %c0_22], %44 {strides = array<i32>} : memref<8x128xf32, #tpu.memory_space<vmem>>, vector<8x128xf32>,
    } else {
    }
    return
  }
  func.func @transform_0(%arg0: i32, %arg1: i32) -> (i32, i32) {
    %c1_i32 = arith.constant 1 : i32
    %0 = arith.muli %arg0, %c1_i32 : i32
    %1 = arith.addi %0, %arg1 : i32
    %c0_i32 = arith.constant 0 : i32
    %2 = arith.minsi %1, %c0_i32 : i32
    %c0_i32_0 = arith.constant 0 : i32
    %c0_i32_1 = arith.constant 0 : i32
    return %2, %c0_i32_0 : i32, i32
  }
  func.func @transform_1(%arg0: i32, %arg1: i32) -> (i32, i32) {
    %c1_i32 = arith.constant 1 : i32
    %0 = arith.muli %arg0, %c1_i32 : i32
    %1 = arith.addi %0, %arg1 : i32
    %c0_i32 = arith.constant 0 : i32
    %2 = arith.minsi %1, %c0_i32 : i32
    %c0_i32_0 = arith.constant 0 : i32
    %c0_i32_1 = arith.constant 0 : i32
    return %2, %c0_i32_0 : i32, i32
  }
  func.func @transform_2(%arg0: i32, %arg1: i32) -> (i32, i32) {
    %c0_i32 = arith.constant 0 : i32
    %c0_i32_0 = arith.constant 0 : i32
    return %arg0, %c0_i32 : i32, i32
  }
}

</mosaic_0001>

<llo_original>
// kernel: tpu_custom_call.1
$region0: #{tpu_custom_call.1}
  #allocation0 [shape = 'u32[]', space=smem, size = 0x4, offset = 0x4, fixed_abs, tag = 'smem constant byte address 0x4 - core index']
  #allocation1 [shape = 'u32[144,128]{1,0:T(1,128)}', space=vmem, size = 0x12000, scoped, tag = 'internal scratch']
  #allocation2 [shape = 'f32[8,1]{1,0:T(8,128)}', space=vmem, size = 0x1000, scoped, tag = 'scratch operand']
  %s0 = inlined_call_operand.vmem [shape: f32[8,32], index: 0, kind: input, shape index: {}]
  %s1 = inlined_call_operand.vmem [shape: s32[8,1], index: 1, kind: input, shape index: {}]
  %s2 = inlined_call_operand.hbm [shape: f32[8,128], index: 2, kind: output, shape index: {}]
  %s3 = sld [smem:[#allocation0]]
  $region26: #{tpu_custom_call.1} parent=0
    _
  %s5 = ssub.s32 1, %s3
  %s6 = scalar_select 0, %s5, %s3
  $region1: #{tpu_custom_call.1} parent=0
    #allocation3 [shape = 'u8[4096]{0}', space=vmem, size = 0x1000, scoped, tag = 'output window, operand 0, single buffered']
    #allocation4 [shape = 's32[1]{0}', space=sflag, size = 0x4, scoped, tag = 'scoped memory for tpu_custom_call.1']
    %7 = vsyncpa [#allocation4], 0
    // Predicated region
    $region2: #{tpu_custom_call.1} parent=1 // pred_check
      _
    $region3: #{tpu_custom_call.1} parent=1 // pred_check_branch
      %9 = sbr.rel (0) target = $region5
    $region4: #{tpu_custom_call.1} parent=1 // pred_region
      %s10 = sadd.s32 0, 0
      %p11 = scmp.lt.s32.totalorder %s10, 0
      %s12 = scalar_select %p11, %s10, 0
      %p13 = scmp.lt.s32.totalorder %s12, 0
      %s14 = scalar_select %p13, %s12, 0
      %s15 = smul.addr %s14, 8
      %s16 = scalar_lea.vmem %s0, %s15
      %s17 = sadd.s32 0, 0
      %p18 = scmp.lt.s32.totalorder %s17, 0
      %s19 = scalar_select %p18, %s17, 0
    $region5: #{tpu_custom_call.1} parent=1 // pred_fallthru
      _
    // Predicated region
    $region6: #{tpu_custom_call.1} parent=1 // pred_check
      _
    $region7: #{tpu_custom_call.1} parent=1 // pred_check_branch
      %21 = sbr.rel (0) target = $region9
    $region8: #{tpu_custom_call.1} parent=1 // pred_region
      %s22 = sadd.s32 0, 0
      %p23 = scmp.lt.s32.totalorder %s22, 0
      %s24 = scalar_select %p23, %s22, 0
      %p25 = scmp.lt.s32.totalorder %s24, 0
      %s26 = scalar_select %p25, %s24, 0
      %s27 = smul.addr %s26, 8
      %s28 = scalar_lea.vmem %s1, %s27
      %s29 = sadd.s32 0, 0
      %p30 = scmp.lt.s32.totalorder %s29, 0
      %s31 = scalar_select %p30, %s29, 0
    $region9: #{tpu_custom_call.1} parent=1 // pred_fallthru
      _
    %s32 = sadd.s32 0, 0
    %p33 = scmp.lt.s32.totalorder %s32, 0
    %s34 = scalar_select %p33, %s32, 0
    %p35 = scmp.lt.s32.totalorder %s34, 0
    %s36 = scalar_select %p35, %s34, 0
    %s37 = smul.addr %s36, 8
    %s38 = scalar_lea.vmem %s0, %s37
    %s39 = sadd.s32 0, 0
    %p40 = scmp.lt.s32.totalorder %s39, 0
    %s41 = scalar_select %p40, %s39, 0
    %p42 = scmp.lt.s32.totalorder %s41, 0
    %s43 = scalar_select %p42, %s41, 0
    %s44 = smul.addr %s43, 8
    %s45 = scalar_lea.vmem %s1, %s44
    %s46 = sadd.s32 0, 0
    %p47 = scmp.lt.s32.totalorder %s46, 0
    %s48 = scalar_select %p47, %s46, 0
    %p49 = scmp.lt.s32.totalorder %s48, 0
    %s50 = scalar_select %p49, %s48, 0
    %s51 = smul.addr %s50, 8
    %s52 = scalar_lea.vmem %s0, %s51
    %s53 = sadd.s32 0, 0
    %p54 = scmp.lt.s32.totalorder %s53, 0
    %s55 = scalar_select %p54, %s53, 0
    %s56 = sadd.s32 0, 0
    %p57 = scmp.lt.s32.totalorder %s56, 0
    %s58 = scalar_select %p57, %s56, 0
    %p59 = scmp.lt.s32.totalorder %s58, 0
    %s60 = scalar_select %p59, %s58, 0
    %s61 = smul.addr %s60, 8
    %s62 = scalar_lea.vmem %s1, %s61
    %s63 = sadd.s32 0, 0
    %p64 = scmp.lt.s32.totalorder %s63, 0
    %s65 = scalar_select %p64, %s63, 0
    %p66 = scmp.eq.s32.totalorder 0, 0
    // Predicated region
    $region10: #{tpu_custom_call.1} parent=1 // pred_check
      %p67 = pneg %p66
    $region11: #{tpu_custom_call.1} parent=1 // pred_check_branch
      %69 = sbr.rel (%p67) target = $region13
    $region12: #{tpu_custom_call.1} parent=1 // pred_region
      %vm70 = vcmask 7168
      %71 = vst.msk [vmem:[#allocation2] sm:$0xff] %vm70, 0.0
    $region13: #{tpu_custom_call.1} parent=1 // pred_fallthru
      _
    %v72 = vld [vmem:[%s52] sm:$0xff]
    %v73 = vld [vmem:[%s62] sm:$0xff]
    %vm74 = vcmask 261120
    %v75 = vsel %vm74, %v72, -inf
    %76 = vmax.xlane.f32.xlu0 %v75
    %v77 = vpop.xlane.xlu0 %76
    %v78 = vsub.f32 %v72, %v77
    %v79 = vmul.f32 %v78, 1.442695
    %v80 = vpow.pop %v79
    %v81 = vsel %vm74, %v80, 0.0
    %82 = vadd.xlane.f32.xlu0 %v81
    %v83 = vpop.xlane.xlu0 %82
    %v84 = vlog2.pop %v83
    %v85 = vmul.f32 %v84, 0.6931472
    %v86 = vlaneseq
    %v87 = vand.u32 %v86, 127
    %88 = vset.pattern.permute.xlu0 0
    %89 = vperm.xlu0 %88, %v73
    %v90 = vpop.permute.xlu0 %89
    %vm91 = vcmp.eq.s32.totalorder %v87, %v90
    %v92 = vsel %vm91, %v78, 0.0
    %v93 = vsel %vm74, %v92, 0.0
    %94 = vadd.xlane.f32.xlu0 %v93
    %v95 = vpop.xlane.xlu0 %94
    %v96 = vsub.f32 %v85, %v95
    %v97 = vsub.f32 0.0, %v96
    %v98 = vmul.f32 %v97, 1.442695
    %v99 = vpow.pop %v98
    %v100 = vsub.f32 1.0, %v99
    %v101 = vmax.f32 %v100, 0.0
    %v102 = vmul.f32 %v101, %v101
    %v103 = vmul.f32 %v102, %v96
    %v104 = vld [vmem:[#allocation2] sm:$0xff]
    %v105 = vadd.f32 %v104, %v103
    %vm106 = vcmask 7168
    %107 = vst.msk [vmem:[#allocation2] sm:$0xff] %vm106, %v105
    // Predicated region
    $region14: #{tpu_custom_call.1} parent=1 // pred_check
      %p108 = pneg %p66
    $region15: #{tpu_custom_call.1} parent=1 // pred_check_branch
      %110 = sbr.rel (%p108) target = $region17
    $region16: #{tpu_custom_call.1} parent=1 // pred_region
      %v111 = vld [vmem:[#allocation2] sm:$0xff]
      %v112 = vsel %vm106, %v111, 0.0
      %113 = vadd.xlane.f32.xlu0 %v112
      %v114 = vpop.xlane.xlu0 %113
      %v115 = vrot.slane %v114, 4
      %v116 = vadd.f32 %v114, %v115
      %v117 = vrot.slane %v116, 2
      %v118 = vadd.f32 %v116, %v117
      %v119 = vrot.slane %v118, 1
      %v120 = vadd.f32 %v118, %v119
      %s121 = vtos %v120
      %s122 = smul.f32 %s121, 0.125
      %v123 = vstv %s122
      %124 = vst [vmem:[#allocation3] sm:$0xff] %v123
    $region17: #{tpu_custom_call.1} parent=1 // pred_fallthru
      _
    // Predicated region
    $region18: #{tpu_custom_call.1} parent=1 // pred_check
      _
    $region19: #{tpu_custom_call.1} parent=1 // pred_check_branch
      %126 = sbr.rel (0) target = $region21
    $region20: #{tpu_custom_call.1} parent=1 // pred_region
      %s128 = ssub.s32 128, 128
      %129 = vsyncadd [#allocation4], %s128
      %s131 = sshll.u32 [#allocation3], 4
      %s132 = int_to_ptr.vmem [resolvable:$true] %s131
      %134 = dma.vmem_to_hbm [thread:$0]  %s132, 128, %s2, [#allocation4]
    $region21: #{tpu_custom_call.1} parent=1 // pred_fallthru
      _
    // Predicated region
    $region22: #{tpu_custom_call.1} parent=1 // pred_check
      _
    $region23: #{tpu_custom_call.1} parent=1 // pred_check_branch
      %136 = sbr.rel (0) target = $region25
    $region24: #{tpu_custom_call.1} parent=1 // pred_region
      %137 = dma.done [#allocation4], 128
    $region25: #{tpu_custom_call.1} parent=1 // pred_fallthru
      _
    %138 = vsyncpa [#allocation4], 1

</llo_original>
